<compile_context>
chip_gen: v7x
topology: tpu7x:2x2x1
jax: 0.10.0
libtpu: 0.0.40
codegen_flags: <defaults>
</compile_context>

<pallas_src>
import functools

import jax
import jax.numpy as jnp
from jax.experimental import pallas as pl
from jax.experimental.pallas import tpu as pltpu


def _round_up(x, m):
    return (x + m - 1) // m * m


def dnn_kernel(x_ref, w1_ref, b1_ref, w2_ref, b2_ref, w3_ref, b3_ref, o_ref):
    # fc1 + bias + ReLU  (bf16 operands, f32 accumulation; dropout == identity)
    h1 = jnp.dot(x_ref[...], w1_ref[...], preferred_element_type=jnp.float32)
    h1 = jnp.maximum(h1 + b1_ref[...], 0.0).astype(jnp.bfloat16)
    # fc2 + bias + ReLU
    h2 = jnp.dot(h1, w2_ref[...], preferred_element_type=jnp.float32)
    h2 = jnp.maximum(h2 + b2_ref[...], 0.0).astype(jnp.bfloat16)
    # fc3 (no activation); store straight into the lane-dense output block.
    out = jnp.dot(h2, w3_ref[...], preferred_element_type=jnp.float32)
    o_ref[...] = (out + b3_ref[...]).astype(o_ref.dtype)


@functools.partial(jax.jit, static_argnames=("tm",))
def dnn_forward(x, params, *, tm=None):
    """x: [B, input_dim] f32.  params: (w1, b1, w2, b2, w3, b3) with
    w* stored as [in_features, out_features] (i.e. PyTorch weight.T)."""
    w1, b1, w2, b2, w3, b3 = params
    B, in_dim = x.shape
    h1_dim = w1.shape[1]          # 512
    h2_dim = w2.shape[1]          # 128
    out_dim = w3.shape[1]         # e.g. 2

    # Pad K (fc1 contraction) and the output N to full 128-lane tiles.
    k_pad = _round_up(max(in_dim, 128), 128)
    n_pad = _round_up(max(out_dim, 128), 128)

    # Batch tile: lane/sublane friendly, capped so VMEM stays tiny even on
    # v7x's 64 MiB; single tile if the batch is small.
    if tm is None:
        tm = min(256, _round_up(B, 16))
    b_pad = _round_up(B, tm)

    bf16 = jnp.bfloat16
    f32 = jnp.float32

    # One-time zero-padding / casting in the wrapper (outside the kernel).
    xp = jnp.zeros((b_pad, k_pad), bf16).at[:B, :in_dim].set(x.astype(bf16))
    w1p = jnp.zeros((k_pad, h1_dim), bf16).at[:in_dim, :].set(w1.astype(bf16))
    w2p = w2.astype(bf16)
    w3p = jnp.zeros((h2_dim, n_pad), bf16).at[:, :out_dim].set(w3.astype(bf16))
    b1p = b1.astype(f32).reshape(1, h1_dim)
    b2p = b2.astype(f32).reshape(1, h2_dim)
    b3p = jnp.zeros((1, n_pad), f32).at[:, :out_dim].set(b3.astype(f32).reshape(1, out_dim))

    grid = (b_pad // tm,)

    def resident(shape):
        # Whole-array block whose block index never changes across the grid,
        # so the weight/bias stays pinned in VMEM (fetched once).
        return pl.BlockSpec(shape, lambda i: tuple(0 for _ in shape))

    out_padded = pl.pallas_call(
        dnn_kernel,
        out_shape=jax.ShapeDtypeStruct((b_pad, n_pad), f32),
        grid=grid,
        in_specs=[
            pl.BlockSpec((tm, k_pad), lambda i: (i, 0)),   # x tile
            resident(w1p.shape), resident(b1p.shape),
            resident(w2p.shape), resident(b2p.shape),
            resident(w3p.shape), resident(b3p.shape),
        ],
        out_specs=pl.BlockSpec((tm, n_pad), lambda i: (i, 0)),
        compiler_params=pltpu.CompilerParams(
            dimension_semantics=("parallel",),
        ),
    )(xp, w1p, b1p, w2p, b2p, w3p, b3p)

    return out_padded[:B, :out_dim]


def init_params(key, input_dim, output_dim=2):
    k1, k2, k3, k4, k5, k6 = jax.random.split(key, 6)
    # Deterministic synthetic init (shapes match the nn.Linear layers,
    # stored as [in_features, out_features]).
    w1 = jax.random.normal(k1, (input_dim, 512), jnp.float32) * 0.05
    b1 = jax.random.normal(k2, (1, 512), jnp.float32) * 0.05
    w2 = jax.random.normal(k3, (512, 128), jnp.float32) * 0.05
    b2 = jax.random.normal(k4, (1, 128), jnp.float32) * 0.05
    w3 = jax.random.normal(k5, (128, output_dim), jnp.float32) * 0.05
    b3 = jax.random.normal(k6, (1, output_dim), jnp.float32) * 0.05
    return (w1, b1, w2, b2, w3, b3)


def dnn_reference(x, params):
    w1, b1, w2, b2, w3, b3 = params
    h1 = jnp.maximum(x @ w1 + b1, 0.0)
    h2 = jnp.maximum(h1 @ w2 + b2, 0.0)
    return h2 @ w3 + b3


if __name__ == "__main__":
    key = jax.random.PRNGKey(0)
    kx, kp = jax.random.split(key)

    batch, input_dim, output_dim = 256, 32, 2
    x = jax.random.normal(kx, (batch, input_dim), jnp.float32)
    params = init_params(kp, input_dim, output_dim)

    out = dnn_forward(x, params, tm=128)   # grid = (2,), pipelined batch tiles
    out = jax.block_until_ready(out)

    ref = dnn_reference(x, params)
    assert out.shape == (batch, output_dim), out.shape
    # bf16 matmul operands with f32 accumulation -> compare with bf16-level tol.
    assert jnp.allclose(out, ref, atol=2e-2, rtol=2e-2), "mismatch vs reference"

    print("KERNEL_OK")
</pallas_src>

<mosaic_0001>
module attributes {stable_mosaic.version = 11 : i64} {
  func.func @dnn_kernel(%arg0: i32, %arg1: memref<128x128xbf16, #tpu.memory_space<vmem>>, %arg2: memref<128x512xbf16, #tpu.memory_space<vmem>>, %arg3: memref<1x512xf32, #tpu.memory_space<vmem>>, %arg4: memref<512x128xbf16, #tpu.memory_space<vmem>>, %arg5: memref<1x128xf32, #tpu.memory_space<vmem>>, %arg6: memref<128x128xbf16, #tpu.memory_space<vmem>>, %arg7: memref<1x128xf32, #tpu.memory_space<vmem>>, %arg8: memref<128x128xf32, #tpu.memory_space<vmem>>) attributes {dimension_semantics = [#tpu.dimension_semantics<parallel>], iteration_bounds = array<i64: 2>, scalar_prefetch = 0 : i64, scratch_operands = 0 : i64, tpu.core_type = #tpu.core_type<tc>, window_params = [{transform_indices = @transform_0, window_bounds = array<i64: 128, 128>}, {pipeline_mode = #tpu.pipeline_mode<synchronous>, transform_indices = @transform_1, window_bounds = array<i64: 128, 512>}, {pipeline_mode = #tpu.pipeline_mode<synchronous>, transform_indices = @transform_2, window_bounds = array<i64: 1, 512>}, {pipeline_mode = #tpu.pipeline_mode<synchronous>, transform_indices = @transform_3, window_bounds = array<i64: 512, 128>}, {pipeline_mode = #tpu.pipeline_mode<synchronous>, transform_indices = @transform_4, window_bounds = array<i64: 1, 128>}, {pipeline_mode = #tpu.pipeline_mode<synchronous>, transform_indices = @transform_5, window_bounds = array<i64: 128, 128>}, {pipeline_mode = #tpu.pipeline_mode<synchronous>, transform_indices = @transform_6, window_bounds = array<i64: 1, 128>}, {transform_indices = @transform_7, window_bounds = array<i64: 128, 128>}]} {
    %c0 = arith.constant 0 : index
    %c0_0 = arith.constant 0 : index
    %0 = vector.load %arg1[%c0, %c0_0] : memref<128x128xbf16, #tpu.memory_space<vmem>>, vector<128x128xbf16>
    %c0_1 = arith.constant 0 : index
    %c0_2 = arith.constant 0 : index
    %1 = vector.load %arg2[%c0_1, %c0_2] : memref<128x512xbf16, #tpu.memory_space<vmem>>, vector<128x512xbf16>
    %cst = arith.constant dense<0.000000e+00> : vector<128x512xf32>
    %2 = tpu.matmul %0, %1, %cst {dimension_numbers = #tpu.dot_dimension_numbers<[1], [0], [0], [1], [0, 0, 1, 1], [], []>} : vector<128x128xbf16>, vector<128x512xbf16>, vector<128x512xf32> -> vector<128x512xf32>
    %c0_3 = arith.constant 0 : index
    %c0_4 = arith.constant 0 : index
    %3 = vector.load %arg3[%c0_3, %c0_4] : memref<1x512xf32, #tpu.memory_space<vmem>>, vector<1x512xf32>
    %4 = vector.broadcast %3 : vector<1x512xf32> to vector<128x512xf32>
    %5 = arith.addf %2, %4 : vector<128x512xf32>
    %cst_5 = arith.constant 0.000000e+00 : f32
    %6 = vector.broadcast %cst_5 : f32 to vector<128x512xf32>
    %7 = arith.maximumf %5, %6 : vector<128x512xf32>
    %8 = arith.truncf %7 : vector<128x512xf32> to vector<128x512xbf16>
    %c0_6 = arith.constant 0 : index
    %c0_7 = arith.constant 0 : index
    %9 = vector.load %arg4[%c0_6, %c0_7] : memref<512x128xbf16, #tpu.memory_space<vmem>>, vector<512x128xbf16>
    %cst_8 = arith.constant dense<0.000000e+00> : vector<128x128xf32>
    %10 = tpu.matmul %8, %9, %cst_8 {dimension_numbers = #tpu.dot_dimension_numbers<[1], [0], [0], [1], [0, 0, 1, 1], [], []>} : vector<128x512xbf16>, vector<512x128xbf16>, vector<128x128xf32> -> vector<128x128xf32>
    %c0_9 = arith.constant 0 : index
    %c0_10 = arith.constant 0 : index
    %11 = vector.load %arg5[%c0_9, %c0_10] : memref<1x128xf32, #tpu.memory_space<vmem>>, vector<1x128xf32>
    %12 = vector.broadcast %11 : vector<1x128xf32> to vector<128x128xf32>
    %13 = arith.addf %10, %12 : vector<128x128xf32>
    %cst_11 = arith.constant 0.000000e+00 : f32
    %14 = vector.broadcast %cst_11 : f32 to vector<128x128xf32>
    %15 = arith.maximumf %13, %14 : vector<128x128xf32>
    %16 = arith.truncf %15 : vector<128x128xf32> to vector<128x128xbf16>
    %c0_12 = arith.constant 0 : index
    %c0_13 = arith.constant 0 : index
    %17 = vector.load %arg6[%c0_12, %c0_13] : memref<128x128xbf16, #tpu.memory_space<vmem>>, vector<128x128xbf16>
    %cst_14 = arith.constant dense<0.000000e+00> : vector<128x128xf32>
    %18 = tpu.matmul %16, %17, %cst_14 {dimension_numbers = #tpu.dot_dimension_numbers<[1], [0], [0], [1], [0, 0, 1, 1], [], []>} : vector<128x128xbf16>, vector<128x128xbf16>, vector<128x128xf32> -> vector<128x128xf32>
    %c0_15 = arith.constant 0 : index
    %c0_16 = arith.constant 0 : index
    %19 = vector.load %arg7[%c0_15, %c0_16] : memref<1x128xf32, #tpu.memory_space<vmem>>, vector<1x128xf32>
    %20 = vector.broadcast %19 : vector<1x128xf32> to vector<128x128xf32>
    %21 = arith.addf %18, %20 : vector<128x128xf32>
    %c0_17 = arith.constant 0 : index
    %c0_18 = arith.constant 0 : index
    %22 = vector.load %arg8[%c0_17, %c0_18] : memref<128x128xf32, #tpu.memory_space<vmem>>, vector<128x128xf32>
    tpu.vector_store %arg8[%c0_17, %c0_18], %21 {strides = array<i32>} : memref<128x128xf32, #tpu.memory_space<vmem>>, vector<128x128xf32>,
    return
  }
  func.func @transform_0(%arg0: i32) -> (i32, i32) {
    %c0_i32 = arith.constant 0 : i32
    %c0_i32_0 = arith.constant 0 : i32
    return %arg0, %c0_i32 : i32, i32
  }
  func.func @transform_1(%arg0: i32) -> (i32, i32) {
    %c0_i32 = arith.constant 0 : i32
    %c0_i32_0 = arith.constant 0 : i32
    %c0_i32_1 = arith.constant 0 : i32
    return %c0_i32, %c0_i32_0 : i32, i32
  }
  func.func @transform_2(%arg0: i32) -> (i32, i32) {
    %c0_i32 = arith.constant 0 : i32
    %c0_i32_0 = arith.constant 0 : i32
    %c0_i32_1 = arith.constant 0 : i32
    return %c0_i32, %c0_i32_0 : i32, i32
  }
  func.func @transform_3(%arg0: i32) -> (i32, i32) {
    %c0_i32 = arith.constant 0 : i32
    %c0_i32_0 = arith.constant 0 : i32
    %c0_i32_1 = arith.constant 0 : i32
    return %c0_i32, %c0_i32_0 : i32, i32
  }
  func.func @transform_4(%arg0: i32) -> (i32, i32) {
    %c0_i32 = arith.constant 0 : i32
    %c0_i32_0 = arith.constant 0 : i32
    %c0_i32_1 = arith.constant 0 : i32
    return %c0_i32, %c0_i32_0 : i32, i32
  }
  func.func @transform_5(%arg0: i32) -> (i32, i32) {
    %c0_i32 = arith.constant 0 : i32
    %c0_i32_0 = arith.constant 0 : i32
    %c0_i32_1 = arith.constant 0 : i32
    return %c0_i32, %c0_i32_0 : i32, i32
  }
  func.func @transform_6(%arg0: i32) -> (i32, i32) {
    %c0_i32 = arith.constant 0 : i32
    %c0_i32_0 = arith.constant 0 : i32
    %c0_i32_1 = arith.constant 0 : i32
    return %c0_i32, %c0_i32_0 : i32, i32
  }
  func.func @transform_7(%arg0: i32) -> (i32, i32) {
    %c0_i32 = arith.constant 0 : i32
    %c0_i32_0 = arith.constant 0 : i32
    return %arg0, %c0_i32 : i32, i32
  }
}

</mosaic_0001>

<llo_original>
// kernel: dnn_forward.1
$region0: #{dnn_forward.1}
  #allocation0 [shape = 'u32[]', space=smem, size = 0x4, offset = 0x4, fixed_abs, tag = 'smem constant byte address 0x4 - core index']
  #allocation1 [shape = 'u32[144,128]{1,0:T(1,128)}', space=vmem, size = 0x12000, scoped, tag = 'internal scratch']
  %s0 = inlined_call_operand.vmem [shape: bf16[256,128], index: 0, kind: input, shape index: {}]
  %s1 = inlined_call_operand.vmem [shape: bf16[128,512], index: 1, kind: input, shape index: {}]
  %s2 = inlined_call_operand.vmem [shape: f32[1,512], index: 2, kind: input, shape index: {}]
  %s3 = inlined_call_operand.vmem [shape: bf16[512,128], index: 3, kind: input, shape index: {}]
  %s4 = inlined_call_operand.vmem [shape: f32[1,128], index: 4, kind: input, shape index: {}]
  %s5 = inlined_call_operand.vmem [shape: bf16[128,128], index: 5, kind: input, shape index: {}]
  %s6 = inlined_call_operand.vmem [shape: f32[1,128], index: 6, kind: input, shape index: {}]
  %s7 = inlined_call_operand.vmem [shape: f32[256,128], index: 7, kind: output, shape index: {}]
  %s8 = sld [smem:[#allocation0]]
  $region61: #{dnn_forward.1} parent=0
    _
  %s10 = ssub.s32 1, %s8
  %s11 = scalar_select 0, %s10, %s8
  loop: start=0, step=1, limit=4
  $region2: #{dnn_forward.1} parent=0 // loop_pre_header
    _
  $region3: #{dnn_forward.1} parent=0 // loop_header
    %s13 = sphi 0, %s17
    %p14 = scmp.ge.s32.totalorder %s13, 4
    %s23 = sphi 0, %s25
    %s26 = sphi 0, %s23
    %s27 = sphi 0, %s26
    %s43 = sphi 0, %s27
    %s47 = sphi 0, %s47
    %s49 = sphi 0, %s47
    %s50 = sphi 0, %s49
    %s64 = sphi 0, %s50
    %s68 = sphi 0, %s68
    %s70 = sphi 0, %s68
    %s71 = sphi 0, %s70
    %s85 = sphi 0, %s71
    %s89 = sphi 0, %s89
    %s91 = sphi 0, %s89
    %s92 = sphi 0, %s91
    %s106 = sphi 0, %s92
    %s110 = sphi 0, %s110
    %s112 = sphi 0, %s110
    %s113 = sphi 0, %s112
    %s127 = sphi 0, %s113
    %s131 = sphi 0, %s131
    %s133 = sphi 0, %s131
    %s134 = sphi 0, %s133
    %s148 = sphi 0, %s134
    %s152 = sphi 0, %s152
    %s154 = sphi 0, %s152
    %s155 = sphi 0, %s154
    %s169 = sphi 0, %s155
    %s175 = sphi 0, %s177
    %s178 = sphi 0, %s175
    %s179 = sphi 0, %s178
    %s195 = sphi 0, %s179
  $region4: #{dnn_forward.1} parent=0 // loop_header_branch
    %16 = sbr.rel (%p14) target = $region8
  $region5: #{dnn_forward.1} parent=0 // loop_body
    %s18 = ssub.s32 %s13, 1
    %s19 = ssub.s32 %s13, 2
    %s20 = sadd.s32 %s13, 1
    %s21 = ssub.s32 %s13, %s20
    %p22 = scmp.eq.s32.totalorder %s21, 0
    %s24 = sadd.s32 %s23, 1
    %s25 = scalar_select %p22, %s23, %s24
    %p28 = pneg %p22
    %p29 = scmp.eq.s32.totalorder %s13, 1
    %p30 = por %p28, %p29
    %p31 = scmp.ne.s32.totalorder %s23, %s26
    %p32 = scmp.eq.s32.totalorder %s13, 0
    %p33 = por %p31, %p32
    %p34 = scmp.ne.s32.totalorder %s23, %s26
    %p35 = scmp.eq.s32.totalorder %s18, 1
    %p36 = por %p34, %p35
    %p37 = scmp.ne.s32.totalorder %s26, %s27
    %p38 = scmp.eq.s32.totalorder %s18, 0
    %p39 = por %p37, %p38
    %p40 = scmp.ne.s32.totalorder %s26, %s27
    %p41 = scmp.eq.s32.totalorder %s19, 1
    %p42 = por %p40, %p41
    %p44 = scmp.ne.s32.totalorder %s27, %s43
    %p45 = scmp.eq.s32.totalorder %s19, 0
    %p46 = por %p44, %p45
    %s48 = sadd.s32 %s47, 1
    %p51 = scmp.eq.s32.totalorder %s13, 1
    %p52 = scmp.ne.s32.totalorder %s47, %s49
    %p53 = scmp.eq.s32.totalorder %s13, 0
    %p54 = por %p52, %p53
    %p55 = scmp.ne.s32.totalorder %s47, %s49
    %p56 = scmp.eq.s32.totalorder %s18, 1
    %p57 = por %p55, %p56
    %p58 = scmp.ne.s32.totalorder %s49, %s50
    %p59 = scmp.eq.s32.totalorder %s18, 0
    %p60 = por %p58, %p59
    %p61 = scmp.ne.s32.totalorder %s49, %s50
    %p62 = scmp.eq.s32.totalorder %s19, 1
    %p63 = por %p61, %p62
    %p65 = scmp.ne.s32.totalorder %s50, %s64
    %p66 = scmp.eq.s32.totalorder %s19, 0
    %p67 = por %p65, %p66
    %s69 = sadd.s32 %s68, 1
    %p72 = scmp.eq.s32.totalorder %s13, 1
    %p73 = scmp.ne.s32.totalorder %s68, %s70
    %p74 = scmp.eq.s32.totalorder %s13, 0
    %p75 = por %p73, %p74
    %p76 = scmp.ne.s32.totalorder %s68, %s70
    %p77 = scmp.eq.s32.totalorder %s18, 1
    %p78 = por %p76, %p77
    %p79 = scmp.ne.s32.totalorder %s70, %s71
    %p80 = scmp.eq.s32.totalorder %s18, 0
    %p81 = por %p79, %p80
    %p82 = scmp.ne.s32.totalorder %s70, %s71
    %p83 = scmp.eq.s32.totalorder %s19, 1
    %p84 = por %p82, %p83
    %p86 = scmp.ne.s32.totalorder %s71, %s85
    %p87 = scmp.eq.s32.totalorder %s19, 0
    %p88 = por %p86, %p87
    %s90 = sadd.s32 %s89, 1
    %p93 = scmp.eq.s32.totalorder %s13, 1
    %p94 = scmp.ne.s32.totalorder %s89, %s91
    %p95 = scmp.eq.s32.totalorder %s13, 0
    %p96 = por %p94, %p95
    %p97 = scmp.ne.s32.totalorder %s89, %s91
    %p98 = scmp.eq.s32.totalorder %s18, 1
    %p99 = por %p97, %p98
    %p100 = scmp.ne.s32.totalorder %s91, %s92
    %p101 = scmp.eq.s32.totalorder %s18, 0
    %p102 = por %p100, %p101
    %p103 = scmp.ne.s32.totalorder %s91, %s92
    %p104 = scmp.eq.s32.totalorder %s19, 1
    %p105 = por %p103, %p104
    %p107 = scmp.ne.s32.totalorder %s92, %s106
    %p108 = scmp.eq.s32.totalorder %s19, 0
    %p109 = por %p107, %p108
    %s111 = sadd.s32 %s110, 1
    %p114 = scmp.eq.s32.totalorder %s13, 1
    %p115 = scmp.ne.s32.totalorder %s110, %s112
    %p116 = scmp.eq.s32.totalorder %s13, 0
    %p117 = por %p115, %p116
    %p118 = scmp.ne.s32.totalorder %s110, %s112
    %p119 = scmp.eq.s32.totalorder %s18, 1
    %p120 = por %p118, %p119
    %p121 = scmp.ne.s32.totalorder %s112, %s113
    %p122 = scmp.eq.s32.totalorder %s18, 0
    %p123 = por %p121, %p122
    %p124 = scmp.ne.s32.totalorder %s112, %s113
    %p125 = scmp.eq.s32.totalorder %s19, 1
    %p126 = por %p124, %p125
    %p128 = scmp.ne.s32.totalorder %s113, %s127
    %p129 = scmp.eq.s32.totalorder %s19, 0
    %p130 = por %p128, %p129
    %s132 = sadd.s32 %s131, 1
    %p135 = scmp.eq.s32.totalorder %s13, 1
    %p136 = scmp.ne.s32.totalorder %s131, %s133
    %p137 = scmp.eq.s32.totalorder %s13, 0
    %p138 = por %p136, %p137
    %p139 = scmp.ne.s32.totalorder %s131, %s133
    %p140 = scmp.eq.s32.totalorder %s18, 1
    %p141 = por %p139, %p140
    %p142 = scmp.ne.s32.totalorder %s133, %s134
    %p143 = scmp.eq.s32.totalorder %s18, 0
    %p144 = por %p142, %p143
    %p145 = scmp.ne.s32.totalorder %s133, %s134
    %p146 = scmp.eq.s32.totalorder %s19, 1
    %p147 = por %p145, %p146
    %p149 = scmp.ne.s32.totalorder %s134, %s148
    %p150 = scmp.eq.s32.totalorder %s19, 0
    %p151 = por %p149, %p150
    %s153 = sadd.s32 %s152, 1
    %p156 = scmp.eq.s32.totalorder %s13, 1
    %p157 = scmp.ne.s32.totalorder %s152, %s154
    %p158 = scmp.eq.s32.totalorder %s13, 0
    %p159 = por %p157, %p158
    %p160 = scmp.ne.s32.totalorder %s152, %s154
    %p161 = scmp.eq.s32.totalorder %s18, 1
    %p162 = por %p160, %p161
    %p163 = scmp.ne.s32.totalorder %s154, %s155
    %p164 = scmp.eq.s32.totalorder %s18, 0
    %p165 = por %p163, %p164
    %p166 = scmp.ne.s32.totalorder %s154, %s155
    %p167 = scmp.eq.s32.totalorder %s19, 1
    %p168 = por %p166, %p167
    %p170 = scmp.ne.s32.totalorder %s155, %s169
    %p171 = scmp.eq.s32.totalorder %s19, 0
    %p172 = por %p170, %p171
    %s173 = ssub.s32 %s13, %s20
    %p174 = scmp.eq.s32.totalorder %s173, 0
    %s176 = sadd.s32 %s175, 1
    %s177 = scalar_select %p174, %s175, %s176
    %p180 = pneg %p174
    %p181 = scmp.eq.s32.totalorder %s13, 1
    %p182 = por %p180, %p181
    %p183 = scmp.ne.s32.totalorder %s175, %s178
    %p184 = scmp.eq.s32.totalorder %s13, 0
    %p185 = por %p183, %p184
    %p186 = scmp.ne.s32.totalorder %s175, %s178
    %p187 = scmp.eq.s32.totalorder %s18, 1
    %p188 = por %p186, %p187
    %p189 = scmp.ne.s32.totalorder %s178, %s179
    %p190 = scmp.eq.s32.totalorder %s18, 0
    %p191 = por %p189, %p190
    %p192 = scmp.ne.s32.totalorder %s178, %s179
    %p193 = scmp.eq.s32.totalorder %s19, 1
    %p194 = por %p192, %p193
    %p196 = scmp.ne.s32.totalorder %s179, %s195
    %p197 = scmp.eq.s32.totalorder %s19, 0
    %p198 = por %p196, %p197
    %p199 = scmp.le.s32.totalorder 1, %s13
    %p200 = scmp.lt.s32.totalorder %s13, 3
    %p201 = pnand %p199, %p200
    %p202 = pneg %p201
    // Predicated region
    $region9: #{dnn_forward.1} parent=5 // pred_check
      _
    $region10: #{dnn_forward.1} parent=5 // pred_check_branch
      %204 = sbr.rel (%p201) target = $region12
    $region11: #{dnn_forward.1} parent=5 // pred_region
      %s205 = ssub.s32 %s13, 1
      // Predicated region
      $region13: #{dnn_forward.1} parent=11 // pred_check
        %p206 = pneg %p60
      $region14: #{dnn_forward.1} parent=11 // pred_check_branch
        %208 = sbr.rel (%p206) target = $region16
      $region15: #{dnn_forward.1} parent=11 // pred_region
        _
      $region16: #{dnn_forward.1} parent=11 // pred_fallthru
        _
      // Predicated region
      $region17: #{dnn_forward.1} parent=11 // pred_check
        %p209 = pneg %p81
      $region18: #{dnn_forward.1} parent=11 // pred_check_branch
        %211 = sbr.rel (%p209) target = $region20
      $region19: #{dnn_forward.1} parent=11 // pred_region
        _
      $region20: #{dnn_forward.1} parent=11 // pred_fallthru
        _
      // Predicated region
      $region21: #{dnn_forward.1} parent=11 // pred_check
        %p212 = pneg %p102
      $region22: #{dnn_forward.1} parent=11 // pred_check_branch
        %214 = sbr.rel (%p212) target = $region24
      $region23: #{dnn_forward.1} parent=11 // pred_region
        _
      $region24: #{dnn_forward.1} parent=11 // pred_fallthru
        _
      // Predicated region
      $region25: #{dnn_forward.1} parent=11 // pred_check
        %p215 = pneg %p123
      $region26: #{dnn_forward.1} parent=11 // pred_check_branch
        %217 = sbr.rel (%p215) target = $region28
      $region27: #{dnn_forward.1} parent=11 // pred_region
        _
      $region28: #{dnn_forward.1} parent=11 // pred_fallthru
        _
      // Predicated region
      $region29: #{dnn_forward.1} parent=11 // pred_check
        %p218 = pneg %p144
      $region30: #{dnn_forward.1} parent=11 // pred_check_branch
        %220 = sbr.rel (%p218) target = $region32
      $region31: #{dnn_forward.1} parent=11 // pred_region
        _
      $region32: #{dnn_forward.1} parent=11 // pred_fallthru
        _
      // Predicated region
      $region33: #{dnn_forward.1} parent=11 // pred_check
        %p221 = pneg %p165
      $region34: #{dnn_forward.1} parent=11 // pred_check_branch
        %223 = sbr.rel (%p221) target = $region36
      $region35: #{dnn_forward.1} parent=11 // pred_region
        _
      $region36: #{dnn_forward.1} parent=11 // pred_fallthru
        _
    $region12: #{dnn_forward.1} parent=5 // pred_fallthru
      _
    %p224 = scmp.lt.s32.totalorder %s13, 2
    // Predicated region
    $region37: #{dnn_forward.1} parent=5 // pred_check
      %p225 = pneg %p224
    $region38: #{dnn_forward.1} parent=5 // pred_check_branch
      %227 = sbr.rel (%p225) target = $region40
    $region39: #{dnn_forward.1} parent=5 // pred_region
      // Predicated region
      $region41: #{dnn_forward.1} parent=39 // pred_check
        %p228 = pneg %p33
      $region42: #{dnn_forward.1} parent=39 // pred_check_branch
        %230 = sbr.rel (%p228) target = $region44
      $region43: #{dnn_forward.1} parent=39 // pred_region
        %s231 = smul.u32 16, %s13
        %p232 = scmp.lt.s32.totalorder %s231, 31
        %s233 = scalar_select %p232, %s231, 31
        %s234 = smul.addr %s233, 4
        %s235 = scalar_lea.vmem %s0, %s234
        %s236 = smul.u32 16, %s13
      $region44: #{dnn_forward.1} parent=39 // pred_fallthru
        _
    $region40: #{dnn_forward.1} parent=5 // pred_fallthru
      _
    %p237 = scmp.le.s32.totalorder 1, %s13
    %p238 = scmp.lt.s32.totalorder %s13, 3
    %p239 = pnand %p237, %p238
    %p240 = pneg %p239
    // Predicated region
    $region45: #{dnn_forward.1} parent=5 // pred_check
      _
    $region46: #{dnn_forward.1} parent=5 // pred_check_branch
      %242 = sbr.rel (%p239) target = $region48
    $region47: #{dnn_forward.1} parent=5 // pred_region
      %s243 = ssub.s32 %s13, 1
      %s244 = smul.u32 16, %s18
      %p245 = scmp.lt.s32.totalorder %s244, 31
      %s246 = scalar_select %p245, %s244, 31
      %s247 = smul.addr %s246, 4
      %s248 = scalar_lea.vmem %s0, %s247
      %p249 = pneg %p39
      %p250 = pneg %p36
      %p251 = pneg %p60
      %p252 = pneg %p57
      %p253 = pneg %p81
      %p254 = pneg %p78
      %p255 = pneg %p102
      %p256 = pneg %p99
      %p257 = pneg %p123
      %p258 = pneg %p120
      %p259 = pneg %p144
      %p260 = pneg %p141
      %p261 = pneg %p165
      %p262 = pneg %p162
      %p263 = pneg %p191
      %p264 = pneg %p188
      %s265 = smul.u32 16, %s18
      %p266 = scmp.lt.s32.totalorder %s265, 31
      %s267 = scalar_select %p266, %s265, 31
      %s268 = smul.addr %s267, 8
      %s269 = scalar_lea.vmem %s7, %s268
      %s270 = smul.u32 16, %s18
      %p271 = scmp.lt.s32.totalorder %s270, 31
      %s272 = scalar_select %p271, %s270, 31
      %s273 = smul.addr %s272, 4
      %s274 = scalar_lea.vmem %s0, %s273
      %s275 = smul.u32 16, %s18
      %s276 = smul.u32 16, %s18
      %p277 = scmp.lt.s32.totalorder %s276, 31
      %s278 = scalar_select %p277, %s276, 31
      %s279 = smul.addr %s278, 8
      %s280 = scalar_lea.vmem %s7, %s279
      %s281 = smul.u32 16, %s18
      %v283 = vld [vmem:[%s274] sm:$0xf]
      %v284 = vld [vmem:[%s274 + $0x4] sm:$0xf]
      %v285 = vld [vmem:[%s274 + $0x8] sm:$0xf]
      %v286 = vld [vmem:[%s274 + $0xc] sm:$0xf]
      %v287 = vld [vmem:[%s274 + $0x10] sm:$0xf]
      %v288 = vld [vmem:[%s274 + $0x14] sm:$0xf]
      %v289 = vld [vmem:[%s274 + $0x18] sm:$0xf]
      %v290 = vld [vmem:[%s274 + $0x1c] sm:$0xf]
      %v291 = vld [vmem:[%s274 + $0x20] sm:$0xf]
      %v292 = vld [vmem:[%s274 + $0x24] sm:$0xf]
      %v293 = vld [vmem:[%s274 + $0x28] sm:$0xf]
      %v294 = vld [vmem:[%s274 + $0x2c] sm:$0xf]
      %v295 = vld [vmem:[%s274 + $0x30] sm:$0xf]
      %v296 = vld [vmem:[%s274 + $0x34] sm:$0xf]
      %v297 = vld [vmem:[%s274 + $0x38] sm:$0xf]
      %v298 = vld [vmem:[%s274 + $0x3c] sm:$0xf]
      %v299 = vld [vmem:[%s1] sm:$0xff]
      %v300 = vld [vmem:[%s1 + $0x8] sm:$0xff]
      %v301 = vld [vmem:[%s1 + $0x10] sm:$0xff]
      %v302 = vld [vmem:[%s1 + $0x18] sm:$0xff]
      %v303 = vld [vmem:[%s1 + $0x20] sm:$0xff]
      %v304 = vld [vmem:[%s1 + $0x28] sm:$0xff]
      %v305 = vld [vmem:[%s1 + $0x30] sm:$0xff]
      %v306 = vld [vmem:[%s1 + $0x38] sm:$0xff]
      %v307 = vld [vmem:[%s1 + $0x40] sm:$0xff]
      %v308 = vld [vmem:[%s1 + $0x48] sm:$0xff]
      %v309 = vld [vmem:[%s1 + $0x50] sm:$0xff]
      %v310 = vld [vmem:[%s1 + $0x58] sm:$0xff]
      %v311 = vld [vmem:[%s1 + $0x60] sm:$0xff]
      %v312 = vld [vmem:[%s1 + $0x68] sm:$0xff]
      %v313 = vld [vmem:[%s1 + $0x70] sm:$0xff]
      %v314 = vld [vmem:[%s1 + $0x78] sm:$0xff]
      %v315 = vld [vmem:[%s1 + $0x80] sm:$0xff]
      %v316 = vld [vmem:[%s1 + $0x88] sm:$0xff]
      %v317 = vld [vmem:[%s1 + $0x90] sm:$0xff]
      %v318 = vld [vmem:[%s1 + $0x98] sm:$0xff]
      %v319 = vld [vmem:[%s1 + $0xa0] sm:$0xff]
      %v320 = vld [vmem:[%s1 + $0xa8] sm:$0xff]
      %v321 = vld [vmem:[%s1 + $0xb0] sm:$0xff]
      %v322 = vld [vmem:[%s1 + $0xb8] sm:$0xff]
      %v323 = vld [vmem:[%s1 + $0xc0] sm:$0xff]
      %v324 = vld [vmem:[%s1 + $0xc8] sm:$0xff]
      %v325 = vld [vmem:[%s1 + $0xd0] sm:$0xff]
      %v326 = vld [vmem:[%s1 + $0xd8] sm:$0xff]
      %v327 = vld [vmem:[%s1 + $0xe0] sm:$0xff]
      %v328 = vld [vmem:[%s1 + $0xe8] sm:$0xff]
      %v329 = vld [vmem:[%s1 + $0xf0] sm:$0xff]
      %v330 = vld [vmem:[%s1 + $0xf8] sm:$0xff]
      %v331 = vld [vmem:[%s2] sm:$0xf]
      %v333 = vlaneseq
      %v334 = vshrl.u32 %v333, 7
      %v335 = vsub.s32 0, %v334
      %v336 = vrot.slane %v331, %v335
      %v337 = vlaneseq
      %v338 = vshrl.u32 %v337, 7
      %v339 = vsub.s32 1, %v338
      %v340 = vrot.slane %v331, %v339
      %v341 = vlaneseq
      %v342 = vshrl.u32 %v341, 7
      %v343 = vsub.s32 2, %v342
      %v344 = vrot.slane %v331, %v343
      %v345 = vlaneseq
      %v346 = vshrl.u32 %v345, 7
      %v347 = vsub.s32 3, %v346
      %v348 = vrot.slane %v331, %v347
      %v369 = vunpack.c.l.b16 %v283
      %v370 = vunpack.c.l.b16 %v284
      %v371 = vunpack.c.l.b16 %v285
      %v372 = vunpack.c.l.b16 %v286
      %v373 = vunpack.c.l.b16 %v287
      %v374 = vunpack.c.l.b16 %v288
      %v375 = vunpack.c.l.b16 %v289
      %v376 = vunpack.c.l.b16 %v290
      %v377 = vunpack.c.l.b16 %v291
      %v378 = vunpack.c.l.b16 %v292
      %v379 = vunpack.c.l.b16 %v293
      %v380 = vunpack.c.l.b16 %v294
      %v381 = vunpack.c.l.b16 %v295
      %v382 = vunpack.c.l.b16 %v296
      %v383 = vunpack.c.l.b16 %v297
      %v384 = vunpack.c.l.b16 %v298
      %v385 = vpack.c.b16 %v370, %v369
      %v386 = vpack.c.b16 %v372, %v371
      %v387 = vpack.c.b16 %v374, %v373
      %v388 = vpack.c.b16 %v376, %v375
      %v389 = vpack.c.b16 %v378, %v377
      %v390 = vpack.c.b16 %v380, %v379
      %v391 = vpack.c.b16 %v382, %v381
      %v392 = vpack.c.b16 %v384, %v383
      %v433 = vunpack.c.l.b16 %v299
      %v434 = vunpack.c.h.b16 %v299
      %v435 = vunpack.c.l.b16 %v300
      %v436 = vunpack.c.h.b16 %v300
      %v437 = vunpack.c.l.b16 %v301
      %v438 = vunpack.c.h.b16 %v301
      %v439 = vunpack.c.l.b16 %v302
      %v440 = vunpack.c.h.b16 %v302
      %v441 = vunpack.c.l.b16 %v303
      %v442 = vunpack.c.h.b16 %v303
      %v443 = vunpack.c.l.b16 %v304
      %v444 = vunpack.c.h.b16 %v304
      %v445 = vunpack.c.l.b16 %v305
      %v446 = vunpack.c.h.b16 %v305
      %v447 = vunpack.c.l.b16 %v306
      %v448 = vunpack.c.h.b16 %v306
      %v449 = vunpack.c.l.b16 %v307
      %v450 = vunpack.c.h.b16 %v307
      %v451 = vunpack.c.l.b16 %v308
      %v452 = vunpack.c.h.b16 %v308
      %v453 = vunpack.c.l.b16 %v309
      %v454 = vunpack.c.h.b16 %v309
      %v455 = vunpack.c.l.b16 %v310
      %v456 = vunpack.c.h.b16 %v310
      %v457 = vunpack.c.l.b16 %v311
      %v458 = vunpack.c.h.b16 %v311
      %v459 = vunpack.c.l.b16 %v312
      %v460 = vunpack.c.h.b16 %v312
      %v461 = vunpack.c.l.b16 %v313
      %v462 = vunpack.c.h.b16 %v313
      %v463 = vunpack.c.l.b16 %v314
      %v464 = vunpack.c.h.b16 %v314
      %v465 = vunpack.c.l.b16 %v315
      %v466 = vunpack.c.h.b16 %v315
      %v467 = vunpack.c.l.b16 %v316
      %v468 = vunpack.c.h.b16 %v316
      %v469 = vunpack.c.l.b16 %v317
      %v470 = vunpack.c.h.b16 %v317
      %v471 = vunpack.c.l.b16 %v318
      %v472 = vunpack.c.h.b16 %v318
      %v473 = vunpack.c.l.b16 %v319
      %v474 = vunpack.c.h.b16 %v319
      %v475 = vunpack.c.l.b16 %v320
      %v476 = vunpack.c.h.b16 %v320
      %v477 = vunpack.c.l.b16 %v321
      %v478 = vunpack.c.h.b16 %v321
      %v479 = vunpack.c.l.b16 %v322
      %v480 = vunpack.c.h.b16 %v322
      %v481 = vunpack.c.l.b16 %v323
      %v482 = vunpack.c.h.b16 %v323
      %v483 = vunpack.c.l.b16 %v324
      %v484 = vunpack.c.h.b16 %v324
      %v485 = vunpack.c.l.b16 %v325
      %v486 = vunpack.c.h.b16 %v325
      %v487 = vunpack.c.l.b16 %v326
      %v488 = vunpack.c.h.b16 %v326
      %v489 = vunpack.c.l.b16 %v327
      %v490 = vunpack.c.h.b16 %v327
      %v491 = vunpack.c.l.b16 %v328
      %v492 = vunpack.c.h.b16 %v328
      %v493 = vunpack.c.l.b16 %v329
      %v494 = vunpack.c.h.b16 %v329
      %v495 = vunpack.c.l.b16 %v330
      %v496 = vunpack.c.h.b16 %v330
      %v497 = vpack.c.b16 %v437, %v433
      %v498 = vpack.c.b16 %v438, %v434
      %v499 = vpack.c.b16 %v439, %v435
      %v500 = vpack.c.b16 %v440, %v436
      %v501 = vpack.c.b16 %v445, %v441
      %v502 = vpack.c.b16 %v446, %v442
      %v503 = vpack.c.b16 %v447, %v443
      %v504 = vpack.c.b16 %v448, %v444
      %v505 = vpack.c.b16 %v453, %v449
      %v506 = vpack.c.b16 %v454, %v450
      %v507 = vpack.c.b16 %v455, %v451
      %v508 = vpack.c.b16 %v456, %v452
      %v509 = vpack.c.b16 %v461, %v457
      %v510 = vpack.c.b16 %v462, %v458
      %v511 = vpack.c.b16 %v463, %v459
      %v512 = vpack.c.b16 %v464, %v460
      %v513 = vpack.c.b16 %v469, %v465
      %v514 = vpack.c.b16 %v470, %v466
      %v515 = vpack.c.b16 %v471, %v467
      %v516 = vpack.c.b16 %v472, %v468
      %v517 = vpack.c.b16 %v477, %v473
      %v518 = vpack.c.b16 %v478, %v474
      %v519 = vpack.c.b16 %v479, %v475
      %v520 = vpack.c.b16 %v480, %v476
      %v521 = vpack.c.b16 %v485, %v481
      %v522 = vpack.c.b16 %v486, %v482
      %v523 = vpack.c.b16 %v487, %v483
      %v524 = vpack.c.b16 %v488, %v484
      %v525 = vpack.c.b16 %v493, %v489
      %v526 = vpack.c.b16 %v494, %v490
      %v527 = vpack.c.b16 %v495, %v491
      %v528 = vpack.c.b16 %v496, %v492
      %561 = vmatprep.subr.bf16.mxu0 %v498
      %562 = vmatpush1.bf16.msra.mxu0 %v497
      %563 = vmatprep.subr.bf16.mxu0 %v502
      %564 = vmatpush1.bf16.msra.mxu0 %v501
      %565 = vmatprep.subr.bf16.mxu0 %v506
      %566 = vmatpush1.bf16.msra.mxu0 %v505
      %567 = vmatprep.subr.bf16.mxu0 %v510
      %568 = vmatpush1.bf16.msra.mxu0 %v509
      %569 = vmatprep.subr.bf16.mxu0 %v514
      %570 = vmatpush1.bf16.msra.mxu0 %v513
      %571 = vmatprep.subr.bf16.mxu0 %v518
      %572 = vmatpush1.bf16.msra.mxu0 %v517
      %573 = vmatprep.subr.bf16.mxu0 %v522
      %574 = vmatpush1.bf16.msra.mxu0 %v521
      %575 = vmatprep.subr.bf16.mxu0 %v526
      %576 = vmatpush1.bf16.msra.mxu0 %v525
      %577 = vmatprep.subr.bf16.mxu0 0
      %578 = vmatpush1.bf16.msra.mxu0 0
      %579 = vmatprep.subr.bf16.mxu0 0
      %580 = vmatpush1.bf16.msra.mxu0 0
      %581 = vmatprep.subr.bf16.mxu0 0
      %582 = vmatpush1.bf16.msra.mxu0 0
      %583 = vmatprep.subr.bf16.mxu0 0
      %584 = vmatpush1.bf16.msra.mxu0 0
      %585 = vmatprep.subr.bf16.mxu0 0
      %586 = vmatpush1.bf16.msra.mxu0 0
      %587 = vmatprep.subr.bf16.mxu0 0
      %588 = vmatpush1.bf16.msra.mxu0 0
      %589 = vmatprep.subr.bf16.mxu0 0
      %590 = vmatpush1.bf16.msra.mxu0 0
      %591 = vmatprep.subr.bf16.mxu0 0
      %592 = vmatpush1.bf16.msra.mxu0 0
      %593 = vmatprep.mubr.bf16.mxu0 0
      %594 = vmatmul.mubr.bf16.gmra.mrb[0].mxu0 %v385
      %v595 = vpop.f32.mrb[0].mxu0
      %v596 = vadd.f32 %v336, %v595
      %v597 = vpop.f32.mrb[0].mxu0
      %v598 = vadd.f32 %v340, %v597
      %v599 = vpop.f32.mrb[0].mxu0
      %v600 = vadd.f32 %v336, %v599
      %v601 = vpop.f32.mrb[0].mxu0
      %v602 = vadd.f32 %v340, %v601
      %603 = vmatprep.mubr.bf16.mxu0 0
      %604 = vmatmul.mubr.bf16.gmra.mrb[0].mxu0 %v386
      %v605 = vpop.f32.mrb[0].mxu0
      %v606 = vadd.f32 %v336, %v605
      %v607 = vpop.f32.mrb[0].mxu0
      %v608 = vadd.f32 %v340, %v607
      %v609 = vpop.f32.mrb[0].mxu0
      %v610 = vadd.f32 %v336, %v609
      %v611 = vpop.f32.mrb[0].mxu0
      %v612 = vadd.f32 %v340, %v611
      %613 = vmatprep.mubr.bf16.mxu0 0
      %614 = vmatmul.mubr.bf16.gmra.mrb[0].mxu0 %v387
      %v615 = vpop.f32.mrb[0].mxu0
      %v616 = vadd.f32 %v336, %v615
      %v617 = vpop.f32.mrb[0].mxu0
      %v618 = vadd.f32 %v340, %v617
      %v619 = vpop.f32.mrb[0].mxu0
      %v620 = vadd.f32 %v336, %v619
      %v621 = vpop.f32.mrb[0].mxu0
      %v622 = vadd.f32 %v340, %v621
      %623 = vmatprep.mubr.bf16.mxu0 0
      %624 = vmatmul.mubr.bf16.gmra.mrb[0].mxu0 %v388
      %v625 = vpop.f32.mrb[0].mxu0
      %v626 = vadd.f32 %v336, %v625
      %v627 = vpop.f32.mrb[0].mxu0
      %v628 = vadd.f32 %v340, %v627
      %v629 = vpop.f32.mrb[0].mxu0
      %v630 = vadd.f32 %v336, %v629
      %v631 = vpop.f32.mrb[0].mxu0
      %v632 = vadd.f32 %v340, %v631
      %633 = vmatprep.mubr.bf16.mxu0 0
      %634 = vmatmul.mubr.bf16.gmra.mrb[0].mxu0 %v389
      %v635 = vpop.f32.mrb[0].mxu0
      %v636 = vadd.f32 %v336, %v635
      %v637 = vpop.f32.mrb[0].mxu0
      %v638 = vadd.f32 %v340, %v637
      %v639 = vpop.f32.mrb[0].mxu0
      %v640 = vadd.f32 %v336, %v639
      %v641 = vpop.f32.mrb[0].mxu0
      %v642 = vadd.f32 %v340, %v641
      %643 = vmatprep.mubr.bf16.mxu0 0
      %644 = vmatmul.mubr.bf16.gmra.mrb[0].mxu0 %v390
      %v645 = vpop.f32.mrb[0].mxu0
      %v646 = vadd.f32 %v336, %v645
      %v647 = vpop.f32.mrb[0].mxu0
      %v648 = vadd.f32 %v340, %v647
      %v649 = vpop.f32.mrb[0].mxu0
      %v650 = vadd.f32 %v336, %v649
      %v651 = vpop.f32.mrb[0].mxu0
      %v652 = vadd.f32 %v340, %v651
      %653 = vmatprep.mubr.bf16.mxu0 0
      %654 = vmatmul.mubr.bf16.gmra.mrb[0].mxu0 %v391
      %v655 = vpop.f32.mrb[0].mxu0
      %v656 = vadd.f32 %v336, %v655
      %v657 = vpop.f32.mrb[0].mxu0
      %v658 = vadd.f32 %v340, %v657
      %v659 = vpop.f32.mrb[0].mxu0
      %v660 = vadd.f32 %v336, %v659
      %v661 = vpop.f32.mrb[0].mxu0
      %v662 = vadd.f32 %v340, %v661
      %663 = vmatprep.mubr.bf16.mxu0 0
      %664 = vmatmul.mubr.bf16.gmra.mrb[0].mxu0 %v392
      %v665 = vpop.f32.mrb[0].mxu0
      %v666 = vadd.f32 %v336, %v665
      %v667 = vpop.f32.mrb[0].mxu0
      %v668 = vadd.f32 %v340, %v667
      %v669 = vpop.f32.mrb[0].mxu0
      %v670 = vadd.f32 %v336, %v669
      %v671 = vpop.f32.mrb[0].mxu0
      %v672 = vadd.f32 %v340, %v671
      %673 = vdwg.mxu0
      %674 = vmatprep.subr.bf16.mxu0 %v500
      %675 = vmatpush1.bf16.msra.mxu0 %v499
      %676 = vmatprep.subr.bf16.mxu0 %v504
      %677 = vmatpush1.bf16.msra.mxu0 %v503
      %678 = vmatprep.subr.bf16.mxu0 %v508
      %679 = vmatpush1.bf16.msra.mxu0 %v507
      %680 = vmatprep.subr.bf16.mxu0 %v512
      %681 = vmatpush1.bf16.msra.mxu0 %v511
      %682 = vmatprep.subr.bf16.mxu0 %v516
      %683 = vmatpush1.bf16.msra.mxu0 %v515
      %684 = vmatprep.subr.bf16.mxu0 %v520
      %685 = vmatpush1.bf16.msra.mxu0 %v519
      %686 = vmatprep.subr.bf16.mxu0 %v524
      %687 = vmatpush1.bf16.msra.mxu0 %v523
      %688 = vmatprep.subr.bf16.mxu0 %v528
      %689 = vmatpush1.bf16.msra.mxu0 %v527
      %690 = vmatprep.subr.bf16.mxu0 0
      %691 = vmatpush1.bf16.msra.mxu0 0
      %692 = vmatprep.subr.bf16.mxu0 0
      %693 = vmatpush1.bf16.msra.mxu0 0
      %694 = vmatprep.subr.bf16.mxu0 0
      %695 = vmatpush1.bf16.msra.mxu0 0
      %696 = vmatprep.subr.bf16.mxu0 0
      %697 = vmatpush1.bf16.msra.mxu0 0
      %698 = vmatprep.subr.bf16.mxu0 0
      %699 = vmatpush1.bf16.msra.mxu0 0
      %700 = vmatprep.subr.bf16.mxu0 0
      %701 = vmatpush1.bf16.msra.mxu0 0
      %702 = vmatprep.subr.bf16.mxu0 0
      %703 = vmatpush1.bf16.msra.mxu0 0
      %704 = vmatprep.subr.bf16.mxu0 0
      %705 = vmatpush1.bf16.msra.mxu0 0
      %706 = vmatprep.mubr.bf16.mxu0 0
      %707 = vmatmul.mubr.bf16.gmra.mrb[0].mxu0 %v385
      %v708 = vpop.f32.mrb[0].mxu0
      %v709 = vadd.f32 %v344, %v708
      %v710 = vpop.f32.mrb[0].mxu0
      %v711 = vadd.f32 %v348, %v710
      %v712 = vpop.f32.mrb[0].mxu0
      %v713 = vadd.f32 %v344, %v712
      %v714 = vpop.f32.mrb[0].mxu0
      %v715 = vadd.f32 %v348, %v714
      %716 = vmatprep.mubr.bf16.mxu0 0
      %717 = vmatmul.mubr.bf16.gmra.mrb[0].mxu0 %v386
      %v718 = vpop.f32.mrb[0].mxu0
      %v719 = vadd.f32 %v344, %v718
      %v720 = vpop.f32.mrb[0].mxu0
      %v721 = vadd.f32 %v348, %v720
      %v722 = vpop.f32.mrb[0].mxu0
      %v723 = vadd.f32 %v344, %v722
      %v724 = vpop.f32.mrb[0].mxu0
      %v725 = vadd.f32 %v348, %v724
      %726 = vmatprep.mubr.bf16.mxu0 0
      %727 = vmatmul.mubr.bf16.gmra.mrb[0].mxu0 %v387
      %v728 = vpop.f32.mrb[0].mxu0
      %v729 = vadd.f32 %v344, %v728
      %v730 = vpop.f32.mrb[0].mxu0
      %v731 = vadd.f32 %v348, %v730
      %v732 = vpop.f32.mrb[0].mxu0
      %v733 = vadd.f32 %v344, %v732
      %v734 = vpop.f32.mrb[0].mxu0
      %v735 = vadd.f32 %v348, %v734
      %736 = vmatprep.mubr.bf16.mxu0 0
      %737 = vmatmul.mubr.bf16.gmra.mrb[0].mxu0 %v388
      %v738 = vpop.f32.mrb[0].mxu0
      %v739 = vadd.f32 %v344, %v738
      %v740 = vpop.f32.mrb[0].mxu0
      %v741 = vadd.f32 %v348, %v740
      %v742 = vpop.f32.mrb[0].mxu0
      %v743 = vadd.f32 %v344, %v742
      %v744 = vpop.f32.mrb[0].mxu0
      %v745 = vadd.f32 %v348, %v744
      %746 = vmatprep.mubr.bf16.mxu0 0
      %747 = vmatmul.mubr.bf16.gmra.mrb[0].mxu0 %v389
      %v748 = vpop.f32.mrb[0].mxu0
      %v749 = vadd.f32 %v344, %v748
      %v750 = vpop.f32.mrb[0].mxu0
      %v751 = vadd.f32 %v348, %v750
      %v752 = vpop.f32.mrb[0].mxu0
      %v753 = vadd.f32 %v344, %v752
      %v754 = vpop.f32.mrb[0].mxu0
      %v755 = vadd.f32 %v348, %v754
      %756 = vmatprep.mubr.bf16.mxu0 0
      %757 = vmatmul.mubr.bf16.gmra.mrb[0].mxu0 %v390
      %v758 = vpop.f32.mrb[0].mxu0
      %v759 = vadd.f32 %v344, %v758
      %v760 = vpop.f32.mrb[0].mxu0
      %v761 = vadd.f32 %v348, %v760
      %v762 = vpop.f32.mrb[0].mxu0
      %v763 = vadd.f32 %v344, %v762
      %v764 = vpop.f32.mrb[0].mxu0
      %v765 = vadd.f32 %v348, %v764
      %766 = vmatprep.mubr.bf16.mxu0 0
      %767 = vmatmul.mubr.bf16.gmra.mrb[0].mxu0 %v391
      %v768 = vpop.f32.mrb[0].mxu0
      %v769 = vadd.f32 %v344, %v768
      %v770 = vpop.f32.mrb[0].mxu0
      %v771 = vadd.f32 %v348, %v770
      %v772 = vpop.f32.mrb[0].mxu0
      %v773 = vadd.f32 %v344, %v772
      %v774 = vpop.f32.mrb[0].mxu0
      %v775 = vadd.f32 %v348, %v774
      %776 = vmatprep.mubr.bf16.mxu0 0
      %777 = vmatmul.mubr.bf16.gmra.mrb[0].mxu0 %v392
      %v778 = vpop.f32.mrb[0].mxu0
      %v779 = vadd.f32 %v344, %v778
      %v780 = vpop.f32.mrb[0].mxu0
      %v781 = vadd.f32 %v348, %v780
      %v782 = vpop.f32.mrb[0].mxu0
      %v783 = vadd.f32 %v344, %v782
      %v784 = vpop.f32.mrb[0].mxu0
      %v785 = vadd.f32 %v348, %v784
      %786 = vdwg.mxu0
      %v787 = vmax.f32 %v596, 0.0
      %v788 = vmax.f32 %v598, 0.0
      %v789 = vmax.f32 %v709, 0.0
      %v790 = vmax.f32 %v711, 0.0
      %v791 = vmax.f32 %v600, 0.0
      %v792 = vmax.f32 %v602, 0.0
      %v793 = vmax.f32 %v713, 0.0
      %v794 = vmax.f32 %v715, 0.0
      %v795 = vmax.f32 %v606, 0.0
      %v796 = vmax.f32 %v608, 0.0
      %v797 = vmax.f32 %v719, 0.0
      %v798 = vmax.f32 %v721, 0.0
      %v799 = vmax.f32 %v610, 0.0
      %v800 = vmax.f32 %v612, 0.0
      %v801 = vmax.f32 %v723, 0.0
      %v802 = vmax.f32 %v725, 0.0
      %v803 = vmax.f32 %v616, 0.0
      %v804 = vmax.f32 %v618, 0.0
      %v805 = vmax.f32 %v729, 0.0
      %v806 = vmax.f32 %v731, 0.0
      %v807 = vmax.f32 %v620, 0.0
      %v808 = vmax.f32 %v622, 0.0
      %v809 = vmax.f32 %v733, 0.0
      %v810 = vmax.f32 %v735, 0.0
      %v811 = vmax.f32 %v626, 0.0
      %v812 = vmax.f32 %v628, 0.0
      %v813 = vmax.f32 %v739, 0.0
      %v814 = vmax.f32 %v741, 0.0
      %v815 = vmax.f32 %v630, 0.0
      %v816 = vmax.f32 %v632, 0.0
      %v817 = vmax.f32 %v743, 0.0
      %v818 = vmax.f32 %v745, 0.0
      %v819 = vmax.f32 %v636, 0.0
      %v820 = vmax.f32 %v638, 0.0
      %v821 = vmax.f32 %v749, 0.0
      %v822 = vmax.f32 %v751, 0.0
      %v823 = vmax.f32 %v640, 0.0
      %v824 = vmax.f32 %v642, 0.0
      %v825 = vmax.f32 %v753, 0.0
      %v826 = vmax.f32 %v755, 0.0
      %v827 = vmax.f32 %v646, 0.0
      %v828 = vmax.f32 %v648, 0.0
      %v829 = vmax.f32 %v759, 0.0
      %v830 = vmax.f32 %v761, 0.0
      %v831 = vmax.f32 %v650, 0.0
      %v832 = vmax.f32 %v652, 0.0
      %v833 = vmax.f32 %v763, 0.0
      %v834 = vmax.f32 %v765, 0.0
      %v835 = vmax.f32 %v656, 0.0
      %v836 = vmax.f32 %v658, 0.0
      %v837 = vmax.f32 %v769, 0.0
      %v838 = vmax.f32 %v771, 0.0
      %v839 = vmax.f32 %v660, 0.0
      %v840 = vmax.f32 %v662, 0.0
      %v841 = vmax.f32 %v773, 0.0
      %v842 = vmax.f32 %v775, 0.0
      %v843 = vmax.f32 %v666, 0.0
      %v844 = vmax.f32 %v668, 0.0
      %v845 = vmax.f32 %v779, 0.0
      %v846 = vmax.f32 %v781, 0.0
      %v847 = vmax.f32 %v670, 0.0
      %v848 = vmax.f32 %v672, 0.0
      %v849 = vmax.f32 %v783, 0.0
      %v850 = vmax.f32 %v785, 0.0
      %v851 = vpack.c.bf16 %v791, %v787
      %v852 = vpack.c.bf16 %v792, %v788
      %v853 = vpack.c.bf16 %v793, %v789
      %v854 = vpack.c.bf16 %v794, %v790
      %v855 = vpack.c.bf16 %v799, %v795
      %v856 = vpack.c.bf16 %v800, %v796
      %v857 = vpack.c.bf16 %v801, %v797
      %v858 = vpack.c.bf16 %v802, %v798
      %v859 = vpack.c.bf16 %v807, %v803
      %v860 = vpack.c.bf16 %v808, %v804
      %v861 = vpack.c.bf16 %v809, %v805
      %v862 = vpack.c.bf16 %v810, %v806
      %v863 = vpack.c.bf16 %v815, %v811
      %v864 = vpack.c.bf16 %v816, %v812
      %v865 = vpack.c.bf16 %v817, %v813
      %v866 = vpack.c.bf16 %v818, %v814
      %v867 = vpack.c.bf16 %v823, %v819
      %v868 = vpack.c.bf16 %v824, %v820
      %v869 = vpack.c.bf16 %v825, %v821
      %v870 = vpack.c.bf16 %v826, %v822
      %v871 = vpack.c.bf16 %v831, %v827
      %v872 = vpack.c.bf16 %v832, %v828
      %v873 = vpack.c.bf16 %v833, %v829
      %v874 = vpack.c.bf16 %v834, %v830
      %v875 = vpack.c.bf16 %v839, %v835
      %v876 = vpack.c.bf16 %v840, %v836
      %v877 = vpack.c.bf16 %v841, %v837
      %v878 = vpack.c.bf16 %v842, %v838
      %v879 = vpack.c.bf16 %v847, %v843
      %v880 = vpack.c.bf16 %v848, %v844
      %v881 = vpack.c.bf16 %v849, %v845
      %v882 = vpack.c.bf16 %v850, %v846
      %v883 = vld [vmem:[%s3] sm:$0xf]
      %v884 = vld [vmem:[%s3 + $0x4] sm:$0xf]
      %v885 = vld [vmem:[%s3 + $0x8] sm:$0xf]
      %v886 = vld [vmem:[%s3 + $0xc] sm:$0xf]
      %v887 = vld [vmem:[%s3 + $0x10] sm:$0xf]
      %v888 = vld [vmem:[%s3 + $0x14] sm:$0xf]
      %v889 = vld [vmem:[%s3 + $0x18] sm:$0xf]
      %v890 = vld [vmem:[%s3 + $0x1c] sm:$0xf]
      %v891 = vld [vmem:[%s3 + $0x20] sm:$0xf]
      %v892 = vld [vmem:[%s3 + $0x24] sm:$0xf]
      %v893 = vld [vmem:[%s3 + $0x28] sm:$0xf]
      %v894 = vld [vmem:[%s3 + $0x2c] sm:$0xf]
      %v895 = vld [vmem:[%s3 + $0x30] sm:$0xf]
      %v896 = vld [vmem:[%s3 + $0x34] sm:$0xf]
      %v897 = vld [vmem:[%s3 + $0x38] sm:$0xf]
      %v898 = vld [vmem:[%s3 + $0x3c] sm:$0xf]
      %v899 = vld [vmem:[%s3 + $0x40] sm:$0xf]
      %v900 = vld [vmem:[%s3 + $0x44] sm:$0xf]
      %v901 = vld [vmem:[%s3 + $0x48] sm:$0xf]
      %v902 = vld [vmem:[%s3 + $0x4c] sm:$0xf]
      %v903 = vld [vmem:[%s3 + $0x50] sm:$0xf]
      %v904 = vld [vmem:[%s3 + $0x54] sm:$0xf]
      %v905 = vld [vmem:[%s3 + $0x58] sm:$0xf]
      %v906 = vld [vmem:[%s3 + $0x5c] sm:$0xf]
      %v907 = vld [vmem:[%s3 + $0x60] sm:$0xf]
      %v908 = vld [vmem:[%s3 + $0x64] sm:$0xf]
      %v909 = vld [vmem:[%s3 + $0x68] sm:$0xf]
      %v910 = vld [vmem:[%s3 + $0x6c] sm:$0xf]
      %v911 = vld [vmem:[%s3 + $0x70] sm:$0xf]
      %v912 = vld [vmem:[%s3 + $0x74] sm:$0xf]
      %v913 = vld [vmem:[%s3 + $0x78] sm:$0xf]
      %v914 = vld [vmem:[%s3 + $0x7c] sm:$0xf]
      %v915 = vld [vmem:[%s3 + $0x80] sm:$0xf]
      %v916 = vld [vmem:[%s3 + $0x84] sm:$0xf]
      %v917 = vld [vmem:[%s3 + $0x88] sm:$0xf]
      %v918 = vld [vmem:[%s3 + $0x8c] sm:$0xf]
      %v919 = vld [vmem:[%s3 + $0x90] sm:$0xf]
      %v920 = vld [vmem:[%s3 + $0x94] sm:$0xf]
      %v921 = vld [vmem:[%s3 + $0x98] sm:$0xf]
      %v922 = vld [vmem:[%s3 + $0x9c] sm:$0xf]
      %v923 = vld [vmem:[%s3 + $0xa0] sm:$0xf]
      %v924 = vld [vmem:[%s3 + $0xa4] sm:$0xf]
      %v925 = vld [vmem:[%s3 + $0xa8] sm:$0xf]
      %v926 = vld [vmem:[%s3 + $0xac] sm:$0xf]
      %v927 = vld [vmem:[%s3 + $0xb0] sm:$0xf]
      %v928 = vld [vmem:[%s3 + $0xb4] sm:$0xf]
      %v929 = vld [vmem:[%s3 + $0xb8] sm:$0xf]
      %v930 = vld [vmem:[%s3 + $0xbc] sm:$0xf]
      %v931 = vld [vmem:[%s3 + $0xc0] sm:$0xf]
      %v932 = vld [vmem:[%s3 + $0xc4] sm:$0xf]
      %v933 = vld [vmem:[%s3 + $0xc8] sm:$0xf]
      %v934 = vld [vmem:[%s3 + $0xcc] sm:$0xf]
      %v935 = vld [vmem:[%s3 + $0xd0] sm:$0xf]
      %v936 = vld [vmem:[%s3 + $0xd4] sm:$0xf]
      %v937 = vld [vmem:[%s3 + $0xd8] sm:$0xf]
      %v938 = vld [vmem:[%s3 + $0xdc] sm:$0xf]
      %v939 = vld [vmem:[%s3 + $0xe0] sm:$0xf]
      %v940 = vld [vmem:[%s3 + $0xe4] sm:$0xf]
      %v941 = vld [vmem:[%s3 + $0xe8] sm:$0xf]
      %v942 = vld [vmem:[%s3 + $0xec] sm:$0xf]
      %v943 = vld [vmem:[%s3 + $0xf0] sm:$0xf]
      %v944 = vld [vmem:[%s3 + $0xf4] sm:$0xf]
      %v945 = vld [vmem:[%s3 + $0xf8] sm:$0xf]
      %v946 = vld [vmem:[%s3 + $0xfc] sm:$0xf]
      %v947 = vld [vmem:[%s4] sm:$0x1]
      %v949 = vlaneseq
      %v950 = vshrl.u32 %v949, 7
      %v951 = vsub.s32 0, %v950
      %v952 = vrot.slane %v947, %v951
      %v1018 = vunpack.c.l.b16 %v883
      %v1019 = vunpack.c.l.b16 %v884
      %v1020 = vunpack.c.l.b16 %v885
      %v1021 = vunpack.c.l.b16 %v886
      %v1022 = vunpack.c.l.b16 %v887
      %v1023 = vunpack.c.l.b16 %v888
      %v1024 = vunpack.c.l.b16 %v889
      %v1025 = vunpack.c.l.b16 %v890
      %v1026 = vunpack.c.l.b16 %v891
      %v1027 = vunpack.c.l.b16 %v892
      %v1028 = vunpack.c.l.b16 %v893
      %v1029 = vunpack.c.l.b16 %v894
      %v1030 = vunpack.c.l.b16 %v895
      %v1031 = vunpack.c.l.b16 %v896
      %v1032 = vunpack.c.l.b16 %v897
      %v1033 = vunpack.c.l.b16 %v898
      %v1034 = vunpack.c.l.b16 %v899
      %v1035 = vunpack.c.l.b16 %v900
      %v1036 = vunpack.c.l.b16 %v901
      %v1037 = vunpack.c.l.b16 %v902
      %v1038 = vunpack.c.l.b16 %v903
      %v1039 = vunpack.c.l.b16 %v904
      %v1040 = vunpack.c.l.b16 %v905
      %v1041 = vunpack.c.l.b16 %v906
      %v1042 = vunpack.c.l.b16 %v907
      %v1043 = vunpack.c.l.b16 %v908
      %v1044 = vunpack.c.l.b16 %v909
      %v1045 = vunpack.c.l.b16 %v910
      %v1046 = vunpack.c.l.b16 %v911
      %v1047 = vunpack.c.l.b16 %v912
      %v1048 = vunpack.c.l.b16 %v913
      %v1049 = vunpack.c.l.b16 %v914
      %v1050 = vunpack.c.l.b16 %v915
      %v1051 = vunpack.c.l.b16 %v916
      %v1052 = vunpack.c.l.b16 %v917
      %v1053 = vunpack.c.l.b16 %v918
      %v1054 = vunpack.c.l.b16 %v919
      %v1055 = vunpack.c.l.b16 %v920
      %v1056 = vunpack.c.l.b16 %v921
      %v1057 = vunpack.c.l.b16 %v922
      %v1058 = vunpack.c.l.b16 %v923
      %v1059 = vunpack.c.l.b16 %v924
      %v1060 = vunpack.c.l.b16 %v925
      %v1061 = vunpack.c.l.b16 %v926
      %v1062 = vunpack.c.l.b16 %v927
      %v1063 = vunpack.c.l.b16 %v928
      %v1064 = vunpack.c.l.b16 %v929
      %v1065 = vunpack.c.l.b16 %v930
      %v1066 = vunpack.c.l.b16 %v931
      %v1067 = vunpack.c.l.b16 %v932
      %v1068 = vunpack.c.l.b16 %v933
      %v1069 = vunpack.c.l.b16 %v934
      %v1070 = vunpack.c.l.b16 %v935
      %v1071 = vunpack.c.l.b16 %v936
      %v1072 = vunpack.c.l.b16 %v937
      %v1073 = vunpack.c.l.b16 %v938
      %v1074 = vunpack.c.l.b16 %v939
      %v1075 = vunpack.c.l.b16 %v940
      %v1076 = vunpack.c.l.b16 %v941
      %v1077 = vunpack.c.l.b16 %v942
      %v1078 = vunpack.c.l.b16 %v943
      %v1079 = vunpack.c.l.b16 %v944
      %v1080 = vunpack.c.l.b16 %v945
      %v1081 = vunpack.c.l.b16 %v946
      %v1082 = vpack.c.b16 %v1019, %v1018
      %v1083 = vpack.c.b16 %v1021, %v1020
      %v1084 = vpack.c.b16 %v1023, %v1022
      %v1085 = vpack.c.b16 %v1025, %v1024
      %v1086 = vpack.c.b16 %v1027, %v1026
      %v1087 = vpack.c.b16 %v1029, %v1028
      %v1088 = vpack.c.b16 %v1031, %v1030
      %v1089 = vpack.c.b16 %v1033, %v1032
      %v1090 = vpack.c.b16 %v1035, %v1034
      %v1091 = vpack.c.b16 %v1037, %v1036
      %v1092 = vpack.c.b16 %v1039, %v1038
      %v1093 = vpack.c.b16 %v1041, %v1040
      %v1094 = vpack.c.b16 %v1043, %v1042
      %v1095 = vpack.c.b16 %v1045, %v1044
      %v1096 = vpack.c.b16 %v1047, %v1046
      %v1097 = vpack.c.b16 %v1049, %v1048
      %v1098 = vpack.c.b16 %v1051, %v1050
      %v1099 = vpack.c.b16 %v1053, %v1052
      %v1100 = vpack.c.b16 %v1055, %v1054
      %v1101 = vpack.c.b16 %v1057, %v1056
      %v1102 = vpack.c.b16 %v1059, %v1058
      %v1103 = vpack.c.b16 %v1061, %v1060
      %v1104 = vpack.c.b16 %v1063, %v1062
      %v1105 = vpack.c.b16 %v1065, %v1064
      %v1106 = vpack.c.b16 %v1067, %v1066
      %v1107 = vpack.c.b16 %v1069, %v1068
      %v1108 = vpack.c.b16 %v1071, %v1070
      %v1109 = vpack.c.b16 %v1073, %v1072
      %v1110 = vpack.c.b16 %v1075, %v1074
      %v1111 = vpack.c.b16 %v1077, %v1076
      %v1112 = vpack.c.b16 %v1079, %v1078
      %v1113 = vpack.c.b16 %v1081, %v1080
      %1146 = vmatprep.subr.bf16.mxu0 0
      %1147 = vmatpush1.bf16.msra.mxu0 %v1082
      %1148 = vmatprep.subr.bf16.mxu0 0
      %1149 = vmatpush1.bf16.msra.mxu0 %v1083
      %1150 = vmatprep.subr.bf16.mxu0 0
      %1151 = vmatpush1.bf16.msra.mxu0 %v1084
      %1152 = vmatprep.subr.bf16.mxu0 0
      %1153 = vmatpush1.bf16.msra.mxu0 %v1085
      %1154 = vmatprep.subr.bf16.mxu0 0
      %1155 = vmatpush1.bf16.msra.mxu0 %v1086
      %1156 = vmatprep.subr.bf16.mxu0 0
      %1157 = vmatpush1.bf16.msra.mxu0 %v1087
      %1158 = vmatprep.subr.bf16.mxu0 0
      %1159 = vmatpush1.bf16.msra.mxu0 %v1088
      %1160 = vmatprep.subr.bf16.mxu0 0
      %1161 = vmatpush1.bf16.msra.mxu0 %v1089
      %1162 = vmatprep.subr.bf16.mxu0 0
      %1163 = vmatpush1.bf16.msra.mxu0 %v1090
      %1164 = vmatprep.subr.bf16.mxu0 0
      %1165 = vmatpush1.bf16.msra.mxu0 %v1091
      %1166 = vmatprep.subr.bf16.mxu0 0
      %1167 = vmatpush1.bf16.msra.mxu0 %v1092
      %1168 = vmatprep.subr.bf16.mxu0 0
      %1169 = vmatpush1.bf16.msra.mxu0 %v1093
      %1170 = vmatprep.subr.bf16.mxu0 0
      %1171 = vmatpush1.bf16.msra.mxu0 %v1094
      %1172 = vmatprep.subr.bf16.mxu0 0
      %1173 = vmatpush1.bf16.msra.mxu0 %v1095
      %1174 = vmatprep.subr.bf16.mxu0 0
      %1175 = vmatpush1.bf16.msra.mxu0 %v1096
      %1176 = vmatprep.subr.bf16.mxu0 0
      %1177 = vmatpush1.bf16.msra.mxu0 %v1097
      %1178 = vmatprep.mubr.bf16.mxu0 %v852
      %1179 = vmatmul.mubr.bf16.gmra.mrb[0].mxu0 %v851
      %v1180 = vpop.f32.mrb[0].mxu0
      %v1181 = vadd.f32 %v952, %v1180
      %v1182 = vpop.f32.mrb[0].mxu0
      %v1183 = vpop.f32.mrb[0].mxu0
      %v1184 = vadd.f32 %v952, %v1183
      %v1185 = vpop.f32.mrb[0].mxu0
      %1186 = vmatprep.mubr.bf16.mxu0 %v856
      %1187 = vmatmul.mubr.bf16.gmra.mrb[0].mxu0 %v855
      %v1188 = vpop.f32.mrb[0].mxu0
      %v1189 = vadd.f32 %v952, %v1188
      %v1190 = vpop.f32.mrb[0].mxu0
      %v1191 = vpop.f32.mrb[0].mxu0
      %v1192 = vadd.f32 %v952, %v1191
      %v1193 = vpop.f32.mrb[0].mxu0
      %1194 = vmatprep.mubr.bf16.mxu0 %v860
      %1195 = vmatmul.mubr.bf16.gmra.mrb[0].mxu0 %v859
      %v1196 = vpop.f32.mrb[0].mxu0
      %v1197 = vadd.f32 %v952, %v1196
      %v1198 = vpop.f32.mrb[0].mxu0
      %v1199 = vpop.f32.mrb[0].mxu0
      %v1200 = vadd.f32 %v952, %v1199
      %v1201 = vpop.f32.mrb[0].mxu0
      %1202 = vmatprep.mubr.bf16.mxu0 %v864
      %1203 = vmatmul.mubr.bf16.gmra.mrb[0].mxu0 %v863
      %v1204 = vpop.f32.mrb[0].mxu0
      %v1205 = vadd.f32 %v952, %v1204
      %v1206 = vpop.f32.mrb[0].mxu0
      %v1207 = vpop.f32.mrb[0].mxu0
      %v1208 = vadd.f32 %v952, %v1207
      %v1209 = vpop.f32.mrb[0].mxu0
      %1210 = vmatprep.mubr.bf16.mxu0 %v868
      %1211 = vmatmul.mubr.bf16.gmra.mrb[0].mxu0 %v867
      %v1212 = vpop.f32.mrb[0].mxu0
      %v1213 = vadd.f32 %v952, %v1212
      %v1214 = vpop.f32.mrb[0].mxu0
      %v1215 = vpop.f32.mrb[0].mxu0
      %v1216 = vadd.f32 %v952, %v1215
      %v1217 = vpop.f32.mrb[0].mxu0
      %1218 = vmatprep.mubr.bf16.mxu0 %v872
      %1219 = vmatmul.mubr.bf16.gmra.mrb[0].mxu0 %v871
      %v1220 = vpop.f32.mrb[0].mxu0
      %v1221 = vadd.f32 %v952, %v1220
      %v1222 = vpop.f32.mrb[0].mxu0
      %v1223 = vpop.f32.mrb[0].mxu0
      %v1224 = vadd.f32 %v952, %v1223
      %v1225 = vpop.f32.mrb[0].mxu0
      %1226 = vmatprep.mubr.bf16.mxu0 %v876
      %1227 = vmatmul.mubr.bf16.gmra.mrb[0].mxu0 %v875
      %v1228 = vpop.f32.mrb[0].mxu0
      %v1229 = vadd.f32 %v952, %v1228
      %v1230 = vpop.f32.mrb[0].mxu0
      %v1231 = vpop.f32.mrb[0].mxu0
      %v1232 = vadd.f32 %v952, %v1231
      %v1233 = vpop.f32.mrb[0].mxu0
      %1234 = vmatprep.mubr.bf16.mxu0 %v880
      %1235 = vmatmul.mubr.bf16.gmra.mrb[0].mxu0 %v879
      %v1236 = vpop.f32.mrb[0].mxu0
      %v1237 = vadd.f32 %v952, %v1236
      %v1238 = vpop.f32.mrb[0].mxu0
      %v1239 = vpop.f32.mrb[0].mxu0
      %v1240 = vadd.f32 %v952, %v1239
      %v1241 = vpop.f32.mrb[0].mxu0
      %1242 = vdwg.mxu0
      %1243 = vmatprep.subr.bf16.mxu0 0
      %1244 = vmatpush1.bf16.msra.mxu0 %v1098
      %1245 = vmatprep.subr.bf16.mxu0 0
      %1246 = vmatpush1.bf16.msra.mxu0 %v1099
      %1247 = vmatprep.subr.bf16.mxu0 0
      %1248 = vmatpush1.bf16.msra.mxu0 %v1100
      %1249 = vmatprep.subr.bf16.mxu0 0
      %1250 = vmatpush1.bf16.msra.mxu0 %v1101
      %1251 = vmatprep.subr.bf16.mxu0 0
      %1252 = vmatpush1.bf16.msra.mxu0 %v1102
      %1253 = vmatprep.subr.bf16.mxu0 0
      %1254 = vmatpush1.bf16.msra.mxu0 %v1103
      %1255 = vmatprep.subr.bf16.mxu0 0
      %1256 = vmatpush1.bf16.msra.mxu0 %v1104
      %1257 = vmatprep.subr.bf16.mxu0 0
      %1258 = vmatpush1.bf16.msra.mxu0 %v1105
      %1259 = vmatprep.subr.bf16.mxu0 0
      %1260 = vmatpush1.bf16.msra.mxu0 %v1106
      %1261 = vmatprep.subr.bf16.mxu0 0
      %1262 = vmatpush1.bf16.msra.mxu0 %v1107
      %1263 = vmatprep.subr.bf16.mxu0 0
      %1264 = vmatpush1.bf16.msra.mxu0 %v1108
      %1265 = vmatprep.subr.bf16.mxu0 0
      %1266 = vmatpush1.bf16.msra.mxu0 %v1109
      %1267 = vmatprep.subr.bf16.mxu0 0
      %1268 = vmatpush1.bf16.msra.mxu0 %v1110
      %1269 = vmatprep.subr.bf16.mxu0 0
      %1270 = vmatpush1.bf16.msra.mxu0 %v1111
      %1271 = vmatprep.subr.bf16.mxu0 0
      %1272 = vmatpush1.bf16.msra.mxu0 %v1112
      %1273 = vmatprep.subr.bf16.mxu0 0
      %1274 = vmatpush1.bf16.msra.mxu0 %v1113
      %1275 = vmatprep.mubr.bf16.mxu0 %v854
      %1276 = vmatmul.mubr.bf16.gmra.mrb[0].mxu0 %v853
      %v1277 = vpop.f32.mrb[0].mxu0
      %v1278 = vadd.f32 %v1181, %v1277
      %v1279 = vpop.f32.mrb[0].mxu0
      %v1280 = vpop.f32.mrb[0].mxu0
      %v1281 = vadd.f32 %v1184, %v1280
      %v1282 = vpop.f32.mrb[0].mxu0
      %1283 = vmatprep.mubr.bf16.mxu0 %v858
      %1284 = vmatmul.mubr.bf16.gmra.mrb[0].mxu0 %v857
      %v1285 = vpop.f32.mrb[0].mxu0
      %v1286 = vadd.f32 %v1189, %v1285
      %v1287 = vpop.f32.mrb[0].mxu0
      %v1288 = vpop.f32.mrb[0].mxu0
      %v1289 = vadd.f32 %v1192, %v1288
      %v1290 = vpop.f32.mrb[0].mxu0
      %1291 = vmatprep.mubr.bf16.mxu0 %v862
      %1292 = vmatmul.mubr.bf16.gmra.mrb[0].mxu0 %v861
      %v1293 = vpop.f32.mrb[0].mxu0
      %v1294 = vadd.f32 %v1197, %v1293
      %v1295 = vpop.f32.mrb[0].mxu0
      %v1296 = vpop.f32.mrb[0].mxu0
      %v1297 = vadd.f32 %v1200, %v1296
      %v1298 = vpop.f32.mrb[0].mxu0
      %1299 = vmatprep.mubr.bf16.mxu0 %v866
      %1300 = vmatmul.mubr.bf16.gmra.mrb[0].mxu0 %v865
      %v1301 = vpop.f32.mrb[0].mxu0
      %v1302 = vadd.f32 %v1205, %v1301
      %v1303 = vpop.f32.mrb[0].mxu0
      %v1304 = vpop.f32.mrb[0].mxu0
      %v1305 = vadd.f32 %v1208, %v1304
      %v1306 = vpop.f32.mrb[0].mxu0
      %1307 = vmatprep.mubr.bf16.mxu0 %v870
      %1308 = vmatmul.mubr.bf16.gmra.mrb[0].mxu0 %v869
      %v1309 = vpop.f32.mrb[0].mxu0
      %v1310 = vadd.f32 %v1213, %v1309
      %v1311 = vpop.f32.mrb[0].mxu0
      %v1312 = vpop.f32.mrb[0].mxu0
      %v1313 = vadd.f32 %v1216, %v1312
      %v1314 = vpop.f32.mrb[0].mxu0
      %1315 = vmatprep.mubr.bf16.mxu0 %v874
      %1316 = vmatmul.mubr.bf16.gmra.mrb[0].mxu0 %v873
      %v1317 = vpop.f32.mrb[0].mxu0
      %v1318 = vadd.f32 %v1221, %v1317
      %v1319 = vpop.f32.mrb[0].mxu0
      %v1320 = vpop.f32.mrb[0].mxu0
      %v1321 = vadd.f32 %v1224, %v1320
      %v1322 = vpop.f32.mrb[0].mxu0
      %1323 = vmatprep.mubr.bf16.mxu0 %v878
      %1324 = vmatmul.mubr.bf16.gmra.mrb[0].mxu0 %v877
      %v1325 = vpop.f32.mrb[0].mxu0
      %v1326 = vadd.f32 %v1229, %v1325
      %v1327 = vpop.f32.mrb[0].mxu0
      %v1328 = vpop.f32.mrb[0].mxu0
      %v1329 = vadd.f32 %v1232, %v1328
      %v1330 = vpop.f32.mrb[0].mxu0
      %1331 = vmatprep.mubr.bf16.mxu0 %v882
      %1332 = vmatmul.mubr.bf16.gmra.mrb[0].mxu0 %v881
      %v1333 = vpop.f32.mrb[0].mxu0
      %v1334 = vadd.f32 %v1237, %v1333
      %v1335 = vpop.f32.mrb[0].mxu0
      %v1336 = vpop.f32.mrb[0].mxu0
      %v1337 = vadd.f32 %v1240, %v1336
      %v1338 = vpop.f32.mrb[0].mxu0
      %1339 = vdwg.mxu0
      %v1340 = vmax.f32 %v1278, 0.0
      %v1341 = vmax.f32 %v1281, 0.0
      %v1342 = vmax.f32 %v1286, 0.0
      %v1343 = vmax.f32 %v1289, 0.0
      %v1344 = vmax.f32 %v1294, 0.0
      %v1345 = vmax.f32 %v1297, 0.0
      %v1346 = vmax.f32 %v1302, 0.0
      %v1347 = vmax.f32 %v1305, 0.0
      %v1348 = vmax.f32 %v1310, 0.0
      %v1349 = vmax.f32 %v1313, 0.0
      %v1350 = vmax.f32 %v1318, 0.0
      %v1351 = vmax.f32 %v1321, 0.0
      %v1352 = vmax.f32 %v1326, 0.0
      %v1353 = vmax.f32 %v1329, 0.0
      %v1354 = vmax.f32 %v1334, 0.0
      %v1355 = vmax.f32 %v1337, 0.0
      %v1356 = vpack.c.bf16 %v1341, %v1340
      %v1357 = vpack.c.bf16 %v1343, %v1342
      %v1358 = vpack.c.bf16 %v1345, %v1344
      %v1359 = vpack.c.bf16 %v1347, %v1346
      %v1360 = vpack.c.bf16 %v1349, %v1348
      %v1361 = vpack.c.bf16 %v1351, %v1350
      %v1362 = vpack.c.bf16 %v1353, %v1352
      %v1363 = vpack.c.bf16 %v1355, %v1354
      %v1364 = vld [vmem:[%s5] sm:$0xf]
      %v1365 = vld [vmem:[%s5 + $0x4] sm:$0xf]
      %v1366 = vld [vmem:[%s5 + $0x8] sm:$0xf]
      %v1367 = vld [vmem:[%s5 + $0xc] sm:$0xf]
      %v1368 = vld [vmem:[%s5 + $0x10] sm:$0xf]
      %v1369 = vld [vmem:[%s5 + $0x14] sm:$0xf]
      %v1370 = vld [vmem:[%s5 + $0x18] sm:$0xf]
      %v1371 = vld [vmem:[%s5 + $0x1c] sm:$0xf]
      %v1372 = vld [vmem:[%s5 + $0x20] sm:$0xf]
      %v1373 = vld [vmem:[%s5 + $0x24] sm:$0xf]
      %v1374 = vld [vmem:[%s5 + $0x28] sm:$0xf]
      %v1375 = vld [vmem:[%s5 + $0x2c] sm:$0xf]
      %v1376 = vld [vmem:[%s5 + $0x30] sm:$0xf]
      %v1377 = vld [vmem:[%s5 + $0x34] sm:$0xf]
      %v1378 = vld [vmem:[%s5 + $0x38] sm:$0xf]
      %v1379 = vld [vmem:[%s5 + $0x3c] sm:$0xf]
      %v1380 = vld [vmem:[%s6] sm:$0x1]
      %v1382 = vlaneseq
      %v1383 = vshrl.u32 %v1382, 7
      %v1384 = vsub.s32 0, %v1383
      %v1385 = vrot.slane %v1380, %v1384
      %v1403 = vunpack.c.l.b16 %v1364
      %v1404 = vunpack.c.l.b16 %v1365
      %v1405 = vunpack.c.l.b16 %v1366
      %v1406 = vunpack.c.l.b16 %v1367
      %v1407 = vunpack.c.l.b16 %v1368
      %v1408 = vunpack.c.l.b16 %v1369
      %v1409 = vunpack.c.l.b16 %v1370
      %v1410 = vunpack.c.l.b16 %v1371
      %v1411 = vunpack.c.l.b16 %v1372
      %v1412 = vunpack.c.l.b16 %v1373
      %v1413 = vunpack.c.l.b16 %v1374
      %v1414 = vunpack.c.l.b16 %v1375
      %v1415 = vunpack.c.l.b16 %v1376
      %v1416 = vunpack.c.l.b16 %v1377
      %v1417 = vunpack.c.l.b16 %v1378
      %v1418 = vunpack.c.l.b16 %v1379
      %v1419 = vpack.c.b16 %v1404, %v1403
      %v1420 = vpack.c.b16 %v1406, %v1405
      %v1421 = vpack.c.b16 %v1408, %v1407
      %v1422 = vpack.c.b16 %v1410, %v1409
      %v1423 = vpack.c.b16 %v1412, %v1411
      %v1424 = vpack.c.b16 %v1414, %v1413
      %v1425 = vpack.c.b16 %v1416, %v1415
      %v1426 = vpack.c.b16 %v1418, %v1417
      %1435 = vmatprep.subr.bf16.mxu0 0
      %1436 = vmatpush1.bf16.msra.mxu0 %v1419
      %1437 = vmatprep.subr.bf16.mxu0 0
      %1438 = vmatpush1.bf16.msra.mxu0 %v1420
      %1439 = vmatprep.subr.bf16.mxu0 0
      %1440 = vmatpush1.bf16.msra.mxu0 %v1421
      %1441 = vmatprep.subr.bf16.mxu0 0
      %1442 = vmatpush1.bf16.msra.mxu0 %v1422
      %1443 = vmatprep.subr.bf16.mxu0 0
      %1444 = vmatpush1.bf16.msra.mxu0 %v1423
      %1445 = vmatprep.subr.bf16.mxu0 0
      %1446 = vmatpush1.bf16.msra.mxu0 %v1424
      %1447 = vmatprep.subr.bf16.mxu0 0
      %1448 = vmatpush1.bf16.msra.mxu0 %v1425
      %1449 = vmatprep.subr.bf16.mxu0 0
      %1450 = vmatpush1.bf16.msra.mxu0 %v1426
      %1451 = vmatprep.subr.bf16.mxu0 0
      %1452 = vmatpush1.bf16.msra.mxu0 0
      %1453 = vmatprep.subr.bf16.mxu0 0
      %1454 = vmatpush1.bf16.msra.mxu0 0
      %1455 = vmatprep.subr.bf16.mxu0 0
      %1456 = vmatpush1.bf16.msra.mxu0 0
      %1457 = vmatprep.subr.bf16.mxu0 0
      %1458 = vmatpush1.bf16.msra.mxu0 0
      %1459 = vmatprep.subr.bf16.mxu0 0
      %1460 = vmatpush1.bf16.msra.mxu0 0
      %1461 = vmatprep.subr.bf16.mxu0 0
      %1462 = vmatpush1.bf16.msra.mxu0 0
      %1463 = vmatprep.subr.bf16.mxu0 0
      %1464 = vmatpush1.bf16.msra.mxu0 0
      %1465 = vmatprep.subr.bf16.mxu0 0
      %1466 = vmatpush1.bf16.msra.mxu0 0
      %1467 = vmatprep.mubr.bf16.mxu0 0
      %1468 = vmatmul.mubr.bf16.gmra.mrb[0].mxu0 %v1356
      %v1469 = vpop.f32.mrb[0].mxu0
      %v1470 = vadd.f32 %v1385, %v1469
      %v1471 = vpop.f32.mrb[0].mxu0
      %v1472 = vpop.f32.mrb[0].mxu0
      %v1473 = vadd.f32 %v1385, %v1472
      %v1474 = vpop.f32.mrb[0].mxu0
      %1475 = vmatprep.mubr.bf16.mxu0 0
      %1476 = vmatmul.mubr.bf16.gmra.mrb[0].mxu0 %v1357
      %v1477 = vpop.f32.mrb[0].mxu0
      %v1478 = vadd.f32 %v1385, %v1477
      %v1479 = vpop.f32.mrb[0].mxu0
      %v1480 = vpop.f32.mrb[0].mxu0
      %v1481 = vadd.f32 %v1385, %v1480
      %v1482 = vpop.f32.mrb[0].mxu0
      %1483 = vmatprep.mubr.bf16.mxu0 0
      %1484 = vmatmul.mubr.bf16.gmra.mrb[0].mxu0 %v1358
      %v1485 = vpop.f32.mrb[0].mxu0
      %v1486 = vadd.f32 %v1385, %v1485
      %v1487 = vpop.f32.mrb[0].mxu0
      %v1488 = vpop.f32.mrb[0].mxu0
      %v1489 = vadd.f32 %v1385, %v1488
      %v1490 = vpop.f32.mrb[0].mxu0
      %1491 = vmatprep.mubr.bf16.mxu0 0
      %1492 = vmatmul.mubr.bf16.gmra.mrb[0].mxu0 %v1359
      %v1493 = vpop.f32.mrb[0].mxu0
      %v1494 = vadd.f32 %v1385, %v1493
      %v1495 = vpop.f32.mrb[0].mxu0
      %v1496 = vpop.f32.mrb[0].mxu0
      %v1497 = vadd.f32 %v1385, %v1496
      %v1498 = vpop.f32.mrb[0].mxu0
      %1499 = vmatprep.mubr.bf16.mxu0 0
      %1500 = vmatmul.mubr.bf16.gmra.mrb[0].mxu0 %v1360
      %v1501 = vpop.f32.mrb[0].mxu0
      %v1502 = vadd.f32 %v1385, %v1501
      %v1503 = vpop.f32.mrb[0].mxu0
      %v1504 = vpop.f32.mrb[0].mxu0
      %v1505 = vadd.f32 %v1385, %v1504
      %v1506 = vpop.f32.mrb[0].mxu0
      %1507 = vmatprep.mubr.bf16.mxu0 0
      %1508 = vmatmul.mubr.bf16.gmra.mrb[0].mxu0 %v1361
      %v1509 = vpop.f32.mrb[0].mxu0
      %v1510 = vadd.f32 %v1385, %v1509
      %v1511 = vpop.f32.mrb[0].mxu0
      %v1512 = vpop.f32.mrb[0].mxu0
      %v1513 = vadd.f32 %v1385, %v1512
      %v1514 = vpop.f32.mrb[0].mxu0
      %1515 = vmatprep.mubr.bf16.mxu0 0
      %1516 = vmatmul.mubr.bf16.gmra.mrb[0].mxu0 %v1362
      %v1517 = vpop.f32.mrb[0].mxu0
      %v1518 = vadd.f32 %v1385, %v1517
      %v1519 = vpop.f32.mrb[0].mxu0
      %v1520 = vpop.f32.mrb[0].mxu0
      %v1521 = vadd.f32 %v1385, %v1520
      %v1522 = vpop.f32.mrb[0].mxu0
      %1523 = vmatprep.mubr.bf16.mxu0 0
      %1524 = vmatmul.mubr.bf16.gmra.mrb[0].mxu0 %v1363
      %v1525 = vpop.f32.mrb[0].mxu0
      %v1526 = vadd.f32 %v1385, %v1525
      %v1527 = vpop.f32.mrb[0].mxu0
      %v1528 = vpop.f32.mrb[0].mxu0
      %v1529 = vadd.f32 %v1385, %v1528
      %v1530 = vpop.f32.mrb[0].mxu0
      %1531 = vdwg.mxu0
      %1532 = vst [vmem:[%s280] sm:$0xff] %v1470
      %1533 = vst [vmem:[%s280 + $0x8] sm:$0xff] %v1473
      %1534 = vst [vmem:[%s280 + $0x10] sm:$0xff] %v1478
      %1535 = vst [vmem:[%s280 + $0x18] sm:$0xff] %v1481
      %1536 = vst [vmem:[%s280 + $0x20] sm:$0xff] %v1486
      %1537 = vst [vmem:[%s280 + $0x28] sm:$0xff] %v1489
      %1538 = vst [vmem:[%s280 + $0x30] sm:$0xff] %v1494
      %1539 = vst [vmem:[%s280 + $0x38] sm:$0xff] %v1497
      %1540 = vst [vmem:[%s280 + $0x40] sm:$0xff] %v1502
      %1541 = vst [vmem:[%s280 + $0x48] sm:$0xff] %v1505
      %1542 = vst [vmem:[%s280 + $0x50] sm:$0xff] %v1510
      %1543 = vst [vmem:[%s280 + $0x58] sm:$0xff] %v1513
      %1544 = vst [vmem:[%s280 + $0x60] sm:$0xff] %v1518
      %1545 = vst [vmem:[%s280 + $0x68] sm:$0xff] %v1521
      %1546 = vst [vmem:[%s280 + $0x70] sm:$0xff] %v1526
      %1547 = vst [vmem:[%s280 + $0x78] sm:$0xff] %v1529
      %s1548 = smul.u32 16, %s18
      %p1549 = scmp.lt.s32.totalorder %s1548, 31
      %s1550 = scalar_select %p1549, %s1548, 31
      %s1551 = smul.addr %s1550, 8
      %s1552 = scalar_lea.vmem %s7, %s1551
      // Predicated region
      $region49: #{dnn_forward.1} parent=47 // pred_check
        %p1553 = pneg %p188
      $region50: #{dnn_forward.1} parent=47 // pred_check_branch
        %1555 = sbr.rel (%p1553) target = $region52
      $region51: #{dnn_forward.1} parent=47 // pred_region
        %s1556 = smul.u32 16, %s18
      $region52: #{dnn_forward.1} parent=47 // pred_fallthru
        _
    $region48: #{dnn_forward.1} parent=5 // pred_fallthru
      _
    %p1557 = scmp.le.s32.totalorder 2, %s13
    // Predicated region
    $region53: #{dnn_forward.1} parent=5 // pred_check
      %p1558 = pneg %p1557
    $region54: #{dnn_forward.1} parent=5 // pred_check_branch
      %1560 = sbr.rel (%p1558) target = $region56
    $region55: #{dnn_forward.1} parent=5 // pred_region
      %s1561 = ssub.s32 %s13, 2
      // Predicated region
      $region57: #{dnn_forward.1} parent=55 // pred_check
        %p1562 = pneg %p194
      $region58: #{dnn_forward.1} parent=55 // pred_check_branch
        %1564 = sbr.rel (%p1562) target = $region60
      $region59: #{dnn_forward.1} parent=55 // pred_region
        %s1565 = smul.u32 16, %s19
        %p1566 = scmp.lt.s32.totalorder %s1565, 31
        %s1567 = scalar_select %p1566, %s1565, 31
        %s1568 = smul.addr %s1567, 8
        %s1569 = scalar_lea.vmem %s7, %s1568
      $region60: #{dnn_forward.1} parent=55 // pred_fallthru
        _
    $region56: #{dnn_forward.1} parent=5 // pred_fallthru
      _
  $region6: #{dnn_forward.1} parent=0 // loop_footer
    %s17 = sadd.s32 1, %s13
  $region7: #{dnn_forward.1} parent=0 // loop_footer_branch
    %12 = sbr.rel target = $region3
  $region8: #{dnn_forward.1} parent=0 // loop_exit
    _

</llo_original>
